<compile_context>
chip_gen: v6e
topology: v6e:2x2x1
jax: 0.10.0
libtpu: 0.0.40
codegen_flags: <defaults>
</compile_context>

<pallas_src>
import jax
import jax.numpy as jnp
from jax.experimental import pallas as pl
from jax.experimental.pallas import tpu as pltpu


def _center_loss_kernel(labels_ref, x_ref, c_ref, loss_ref):
    # labels_ref: (B,) int32 in SMEM (scalar prefetch; mainly consumed by the
    #             index_maps to drive the centers gather)
    # x_ref:      (1, D) f32  -- row b of x
    # c_ref:      (1, D) f32  -- gathered row centers[labels[b]]
    # loss_ref:   (1, 1) f32  -- resident accumulator (constant block index)
    b = pl.program_id(0)

    @pl.when(b == 0)
    def _():
        loss_ref[...] = jnp.zeros_like(loss_ref)

    x = x_ref[...].astype(jnp.float32)
    c = c_ref[...].astype(jnp.float32)

    # ||x_b||^2 + ||c||^2 - 2 x_b . c  (same expansion as the reference's
    # distmat entry for the selected class), single cross-lane reduce.
    d = jnp.sum(x * x + c * c - 2.0 * (x * c), axis=1, keepdims=True)  # (1, 1)

    # clamp of the surviving (masked-in) entry, exactly as in the reference
    loss_ref[...] = loss_ref[...] + jnp.clip(d, 1e-12, 1e12)


def center_loss(x, labels, centers):
    """x: (B, D) f32, labels: (B,) int, centers: (C, D) f32 -> scalar f32."""
    B, D = x.shape
    C, _ = centers.shape
    labels = labels.astype(jnp.int32)

    # Add a unit middle axis so every block's last-two dims equal the array's
    # last-two dims (keeps 1-row tiles legal under the (8, 128) block rule).
    x3 = x.reshape(B, 1, D)
    c3 = centers.reshape(C, 1, D)

    summed = pl.pallas_call(
        _center_loss_kernel,
        out_shape=jax.ShapeDtypeStruct((1, 1), jnp.float32),
        grid_spec=pltpu.PrefetchScalarGridSpec(
            num_scalar_prefetch=1,          # labels -> SMEM, fed to index_maps
            grid=(B,),
            in_specs=[
                # row b of x
                pl.BlockSpec((None, 1, D), lambda b, lbl: (b, 0, 0)),
                # gathered centers row: centers[labels[b]]
                # NOTE: labels are assumed in [0, C); no runtime bounds check.
                pl.BlockSpec((None, 1, D), lambda b, lbl: (lbl[b], 0, 0)),
            ],
            out_specs=pl.BlockSpec((1, 1), lambda b, lbl: (0, 0)),
        ),
        compiler_params=pltpu.CompilerParams(
            # output block is an accumulator across the grid axis
            dimension_semantics=("arbitrary",),
        ),
    )(labels, x3, c3)

    # clamp-after-mask quirk of the reference: each of the B*(C-1) masked-out
    # entries contributes exactly 1e-12 to the sum.
    masked_out = jnp.float32(B * (C - 1)) * jnp.float32(1e-12)
    return (summed[0, 0] + masked_out) / jnp.float32(B)


def _reference(x, labels, centers):
    # Pure-JAX port of the PyTorch forward (full distmat + mask + clamp).
    B = x.shape[0]
    C = centers.shape[0]
    xsq = jnp.sum(x ** 2, axis=1, keepdims=True)
    csq = jnp.sum(centers ** 2, axis=1, keepdims=True)
    distmat = xsq + csq.T - 2.0 * (x @ centers.T)
    mask = (labels[:, None] == jnp.arange(C)[None, :]).astype(jnp.float32)
    dist = jnp.clip(distmat * mask, 1e-12, 1e12)
    return jnp.sum(dist) / B


if __name__ == "__main__":
    # Small shapes consistent with the module (num_classes, feat_dim), with a
    # lane-aligned feature dim (multiple of 128) per TPU layout guidance.
    batch, num_classes, feat_dim = 8, 64, 256

    key = jax.random.PRNGKey(0)
    k_x, k_c, k_l = jax.random.split(key, 3)

    x = jax.random.normal(k_x, (batch, feat_dim), dtype=jnp.float32)
    # deterministic "parameter", analogous to torch.randn(num_classes, feat_dim)
    centers = jax.random.normal(k_c, (num_classes, feat_dim), dtype=jnp.float32)
    labels = jax.random.randint(k_l, (batch,), 0, num_classes, dtype=jnp.int32)

    loss = center_loss(x, labels, centers)
    jax.block_until_ready(loss)

    ref = _reference(x, labels, centers)
    assert jnp.allclose(loss, ref, rtol=1e-5, atol=1e-4), (loss, ref)

    print("KERNEL_OK")
</pallas_src>

<mosaic_0001>
module attributes {stable_mosaic.version = 11 : i64} {
  func.func @_center_loss_kernel(%arg0: i32, %arg1: memref<8xi32, #tpu.memory_space<smem>>, %arg2: memref<1x1x256xf32, #tpu.memory_space<vmem>>, %arg3: memref<1x1x256xf32, #tpu.memory_space<vmem>>, %arg4: memref<1x1xf32, #tpu.memory_space<vmem>>) attributes {dimension_semantics = [#tpu.dimension_semantics<arbitrary>], iteration_bounds = array<i64: 8>, scalar_prefetch = 1 : i64, scratch_operands = 0 : i64, tpu.core_type = #tpu.core_type<tc>, window_params = [{transform_indices = @transform_0, window_bounds = array<i64: 1, 1, 256>}, {transform_indices = @transform_1, window_bounds = array<i64: 1, 1, 256>}, {pipeline_mode = #tpu.pipeline_mode<synchronous>, transform_indices = @transform_2, window_bounds = array<i64: 1, 1>}]} {
    %c0_i32 = arith.constant 0 : i32
    %0 = arith.cmpi eq, %arg0, %c0_i32 : i32
    %1 = arith.extui %0 : i1 to i32
    %c0_i32_0 = arith.constant 0 : i32
    %2 = arith.cmpi ne, %1, %c0_i32_0 : i32
    scf.if %2 {
      %cst_13 = arith.constant 0.000000e+00 : f32
      %23 = vector.broadcast %cst_13 : f32 to vector<1x1xf32>
      %c0_14 = arith.constant 0 : index
      %c0_15 = arith.constant 0 : index
      %24 = vector.load %arg4[%c0_14, %c0_15] : memref<1x1xf32, #tpu.memory_space<vmem>>, vector<1x1xf32>
      tpu.vector_store %arg4[%c0_14, %c0_15], %23 {strides = array<i32>} : memref<1x1xf32, #tpu.memory_space<vmem>>, vector<1x1xf32>,
    } else {
    }
    %c0 = arith.constant 0 : index
    %c0_1 = arith.constant 0 : index
    %c0_2 = arith.constant 0 : index
    %3 = vector.load %arg2[%c0, %c0_1, %c0_2] : memref<1x1x256xf32, #tpu.memory_space<vmem>>, vector<1x1x256xf32>
    %4 = vector.shape_cast %3 : vector<1x1x256xf32> to vector<1x256xf32>
    %c0_3 = arith.constant 0 : index
    %c0_4 = arith.constant 0 : index
    %c0_5 = arith.constant 0 : index
    %5 = vector.load %arg3[%c0_3, %c0_4, %c0_5] : memref<1x1x256xf32, #tpu.memory_space<vmem>>, vector<1x1x256xf32>
    %6 = vector.shape_cast %5 : vector<1x1x256xf32> to vector<1x256xf32>
    %7 = arith.mulf %4, %4 : vector<1x256xf32>
    %8 = arith.mulf %6, %6 : vector<1x256xf32>
    %9 = arith.addf %7, %8 : vector<1x256xf32>
    %10 = arith.mulf %4, %6 : vector<1x256xf32>
    %cst = arith.constant 2.000000e+00 : f32
    %11 = vector.broadcast %cst : f32 to vector<1x256xf32>
    %12 = arith.mulf %11, %10 : vector<1x256xf32>
    %13 = arith.subf %9, %12 : vector<1x256xf32>
    %cst_6 = arith.constant dense<0.000000e+00> : vector<1xf32>
    %14 = vector.multi_reduction <add>, %13, %cst_6 [1] : vector<1x256xf32> to vector<1xf32>
    %15 = vector.shape_cast %14 : vector<1xf32> to vector<1x1xf32>
    %c0_7 = arith.constant 0 : index
    %c0_8 = arith.constant 0 : index
    %16 = vector.load %arg4[%c0_7, %c0_8] : memref<1x1xf32, #tpu.memory_space<vmem>>, vector<1x1xf32>
    %cst_9 = arith.constant 9.99999996E-13 : f32
    %cst_10 = arith.constant 9.99999995E+11 : f32
    %17 = vector.broadcast %cst_9 : f32 to vector<1x1xf32>
    %18 = arith.maximumf %17, %15 : vector<1x1xf32>
    %19 = vector.broadcast %cst_10 : f32 to vector<1x1xf32>
    %20 = arith.minimumf %19, %18 : vector<1x1xf32>
    %21 = arith.addf %16, %20 : vector<1x1xf32>
    %c0_11 = arith.constant 0 : index
    %c0_12 = arith.constant 0 : index
    %22 = vector.load %arg4[%c0_11, %c0_12] : memref<1x1xf32, #tpu.memory_space<vmem>>, vector<1x1xf32>
    tpu.vector_store %arg4[%c0_11, %c0_12], %21 {strides = array<i32>} : memref<1x1xf32, #tpu.memory_space<vmem>>, vector<1x1xf32>,
    return
  }
  func.func @transform_0(%arg0: i32, %arg1: memref<8xi32, #tpu.memory_space<smem>>) -> (i32, i32, i32) {
    %c0_i32 = arith.constant 0 : i32
    %c0_i32_0 = arith.constant 0 : i32
    %c0_i32_1 = arith.constant 0 : i32
    return %arg0, %c0_i32, %c0_i32_0 : i32, i32, i32
  }
  func.func @transform_1(%arg0: i32, %arg1: memref<8xi32, #tpu.memory_space<smem>>) -> (i32, i32, i32) {
    %0 = arith.index_cast %arg0 : i32 to index
    %1 = memref.load %arg1[%0] : memref<8xi32, #tpu.memory_space<smem>>
    %c0_i32 = arith.constant 0 : i32
    %c0_i32_0 = arith.constant 0 : i32
    %c0_i32_1 = arith.constant 0 : i32
    return %1, %c0_i32, %c0_i32_0 : i32, i32, i32
  }
  func.func @transform_2(%arg0: i32, %arg1: memref<8xi32, #tpu.memory_space<smem>>) -> (i32, i32) {
    %c0_i32 = arith.constant 0 : i32
    %c0_i32_0 = arith.constant 0 : i32
    %c0_i32_1 = arith.constant 0 : i32
    return %c0_i32, %c0_i32_0 : i32, i32
  }
}

</mosaic_0001>

<llo_original>
// kernel: tpu_custom_call.1
$region0: #{tpu_custom_call.1}
  #allocation0 [shape = 'u32[]', space=smem, size = 0x4, offset = 0x4, fixed_abs, tag = 'smem constant byte address 0x4 - core index']
  #allocation1 [shape = 'u32[144,128]{1,0:T(1,128)}', space=vmem, size = 0x12000, scoped, tag = 'internal scratch']
  #allocation2 [shape = 's32[1]{0}', space=sflag, size = 0x4, scoped, tag = 'scoped memory for tpu_custom_call.1']
  #allocation3 [shape = 'u8[512]{0}', space=smem, size = 0x200, scoped, tag = 'prefetched SMEM operand 0']
  %s0 = inlined_call_operand.hbm [shape: s32[8], index: 0, kind: input, shape index: {}]
  %s1 = inlined_call_operand.hbm [shape: f32[8,1,256], index: 1, kind: input, shape index: {}]
  %s2 = inlined_call_operand.hbm [shape: f32[64,1,256], index: 2, kind: input, shape index: {}]
  %s3 = inlined_call_operand.hbm [shape: f32[1,1], index: 3, kind: output, shape index: {}]
  %s4 = sld [smem:[#allocation0]]
  $region53: #{tpu_custom_call.1} parent=0
    _
  %s6 = ssub.s32 1, %s4
  %s7 = scalar_select 0, %s6, %s4
  %9 = dma.hbm_to_smem %s0, 16, [#allocation3], [#allocation2]
  %10 = dma.done [#allocation2], 16
  %11 = sfence
  $region1: #{tpu_custom_call.1} parent=0
    #allocation4 [shape = 'u8[2048]{0}', space=vmem, size = 0x800, scoped, tag = 'input window, operand 1']
    #allocation5 [shape = 's32[2]{0}', space=sflag, size = 0x8, scoped, tag = 'scoped memory for tpu_custom_call.1']
    #allocation6 [shape = 's32[2]{0}', space=sflag, size = 0x8, scoped, tag = 'scoped memory for tpu_custom_call.1']
    #allocation7 [shape = 'u8[2048]{0}', space=vmem, size = 0x800, scoped, tag = 'input window, operand 2']
    #allocation8 [shape = 's32[2]{0}', space=sflag, size = 0x8, scoped, tag = 'scoped memory for tpu_custom_call.1']
    #allocation9 [shape = 'u8[512]{0}', space=vmem, size = 0x400, scoped, tag = 'output window, operand 0, single buffered']
    %12 = vsyncpa [#allocation5], 0
    %s13 = scalar_lea.sflag [#allocation5], 1
    %14 = vsyncpa %s13, 0
    %15 = vsyncpa [#allocation8], 0
    %s16 = scalar_lea.sflag [#allocation8], 1
    %17 = vsyncpa %s16, 0
    %18 = vsyncpa [#allocation6], 0
    loop: start=0, step=1, limit=10
    $region2: #{tpu_custom_call.1} parent=1 // loop_pre_header
      _
    $region3: #{tpu_custom_call.1} parent=1 // loop_header
      %s20 = sphi 0, %s24
      %p21 = scmp.ge.s32.totalorder %s20, 10
      %s30 = sphi 0, %s32
      %s33 = sphi 0, %s30
      %s34 = sphi 0, %s33
      %s50 = sphi 0, %s34
      %s58 = sphi 0, %s60
      %s61 = sphi 0, %s58
      %s62 = sphi 0, %s61
      %s78 = sphi 0, %s62
      %s82 = sphi 0, %s82
      %s84 = sphi 0, %s82
      %s85 = sphi 0, %s84
      %s99 = sphi 0, %s85
    $region4: #{tpu_custom_call.1} parent=1 // loop_header_branch
      %23 = sbr.rel (%p21) target = $region8
    $region5: #{tpu_custom_call.1} parent=1 // loop_body
      %s25 = ssub.s32 %s20, 1
      %s26 = ssub.s32 %s20, 2
      %s27 = sadd.s32 %s20, 1
      %s28 = ssub.s32 %s20, %s27
      %p29 = scmp.eq.s32.totalorder %s28, 0
      %s31 = sadd.s32 %s30, 1
      %s32 = scalar_select %p29, %s30, %s31
      %p35 = pneg %p29
      %p36 = scmp.eq.s32.totalorder %s20, 7
      %p37 = por %p35, %p36
      %p38 = scmp.ne.s32.totalorder %s30, %s33
      %p39 = scmp.eq.s32.totalorder %s20, 0
      %p40 = por %p38, %p39
      %p41 = scmp.ne.s32.totalorder %s30, %s33
      %p42 = scmp.eq.s32.totalorder %s25, 7
      %p43 = por %p41, %p42
      %p44 = scmp.ne.s32.totalorder %s33, %s34
      %p45 = scmp.eq.s32.totalorder %s25, 0
      %p46 = por %p44, %p45
      %p47 = scmp.ne.s32.totalorder %s33, %s34
      %p48 = scmp.eq.s32.totalorder %s26, 7
      %p49 = por %p47, %p48
      %p51 = scmp.ne.s32.totalorder %s34, %s50
      %p52 = scmp.eq.s32.totalorder %s26, 0
      %p53 = por %p51, %p52
      %s54 = sld [smem:[#allocation3 + %s20]]
      %s55 = sld [smem:[#allocation3 + %s27]]
      %s56 = ssub.s32 %s54, %s55
      %p57 = scmp.eq.s32.totalorder %s56, 0
      %s59 = sadd.s32 %s58, 1
      %s60 = scalar_select %p57, %s58, %s59
      %p63 = pneg %p57
      %p64 = scmp.eq.s32.totalorder %s20, 7
      %p65 = por %p63, %p64
      %p66 = scmp.ne.s32.totalorder %s58, %s61
      %p67 = scmp.eq.s32.totalorder %s20, 0
      %p68 = por %p66, %p67
      %p69 = scmp.ne.s32.totalorder %s58, %s61
      %p70 = scmp.eq.s32.totalorder %s25, 7
      %p71 = por %p69, %p70
      %p72 = scmp.ne.s32.totalorder %s61, %s62
      %p73 = scmp.eq.s32.totalorder %s25, 0
      %p74 = por %p72, %p73
      %p75 = scmp.ne.s32.totalorder %s61, %s62
      %p76 = scmp.eq.s32.totalorder %s26, 7
      %p77 = por %p75, %p76
      %p79 = scmp.ne.s32.totalorder %s62, %s78
      %p80 = scmp.eq.s32.totalorder %s26, 0
      %p81 = por %p79, %p80
      %s83 = sadd.s32 %s82, 1
      %p86 = scmp.eq.s32.totalorder %s20, 7
      %p87 = scmp.ne.s32.totalorder %s82, %s84
      %p88 = scmp.eq.s32.totalorder %s20, 0
      %p89 = por %p87, %p88
      %p90 = scmp.ne.s32.totalorder %s82, %s84
      %p91 = scmp.eq.s32.totalorder %s25, 7
      %p92 = por %p90, %p91
      %p93 = scmp.ne.s32.totalorder %s84, %s85
      %p94 = scmp.eq.s32.totalorder %s25, 0
      %p95 = por %p93, %p94
      %p96 = scmp.ne.s32.totalorder %s84, %s85
      %p97 = scmp.eq.s32.totalorder %s26, 7
      %p98 = por %p96, %p97
      %p100 = scmp.ne.s32.totalorder %s85, %s99
      %p101 = scmp.eq.s32.totalorder %s26, 0
      %p102 = por %p100, %p101
      %p103 = scmp.le.s32.totalorder 1, %s20
      %p104 = scmp.lt.s32.totalorder %s20, 9
      %p105 = pnand %p103, %p104
      %p106 = pneg %p105
      // Predicated region
      $region9: #{tpu_custom_call.1} parent=5 // pred_check
        _
      $region10: #{tpu_custom_call.1} parent=5 // pred_check_branch
        %108 = sbr.rel (%p105) target = $region12
      $region11: #{tpu_custom_call.1} parent=5 // pred_region
        %s109 = ssub.s32 %s20, 1
      $region12: #{tpu_custom_call.1} parent=5 // pred_fallthru
        _
      %p110 = scmp.lt.s32.totalorder %s20, 8
      // Predicated region
      $region13: #{tpu_custom_call.1} parent=5 // pred_check
        %p111 = pneg %p110
      $region14: #{tpu_custom_call.1} parent=5 // pred_check_branch
        %113 = sbr.rel (%p111) target = $region16
      $region15: #{tpu_custom_call.1} parent=5 // pred_region
        // Predicated region
        $region17: #{tpu_custom_call.1} parent=15 // pred_check
          %p114 = pneg %p40
        $region18: #{tpu_custom_call.1} parent=15 // pred_check_branch
          %116 = sbr.rel (%p114) target = $region20
        $region19: #{tpu_custom_call.1} parent=15 // pred_region
          %s117 = sand.u32 %s30, 1
          %s118 = scalar_lea.sflag [#allocation5], %s117
          %s119 = sand.u32 %s30, 1
          %s120 = smul.addr %s119, 2
          %s121 = scalar_lea.vmem [#allocation4], %s120
          %s123 = ssub.s32 32, 32
          %124 = vsyncadd %s118, %s123
          %s125 = smul.addr %s20, 2
          %s126 = smul.addr %s125, 16
          %s127 = scalar_lea.hbm %s1, %s126
          %s129 = sshll.u32 %s121, 4
          %s130 = int_to_ptr.vmem [resolvable:$true] %s129
          %132 = dma.hbm_to_vmem [thread:$0]  %s127, 32, %s130, %s118
        $region20: #{tpu_custom_call.1} parent=15 // pred_fallthru
          _
        // Predicated region
        $region21: #{tpu_custom_call.1} parent=15 // pred_check
          %p133 = pneg %p68
        $region22: #{tpu_custom_call.1} parent=15 // pred_check_branch
          %135 = sbr.rel (%p133) target = $region24
        $region23: #{tpu_custom_call.1} parent=15 // pred_region
          %s136 = sand.u32 %s58, 1
          %s137 = scalar_lea.sflag [#allocation8], %s136
          %s138 = sand.u32 %s58, 1
          %s139 = smul.addr %s138, 2
          %s140 = scalar_lea.vmem [#allocation7], %s139
          %s141 = sld [smem:[#allocation3 + %s20]]
          %s143 = ssub.s32 32, 32
          %144 = vsyncadd %s137, %s143
          %s145 = smul.addr %s141, 2
          %s146 = smul.addr %s145, 16
          %s147 = scalar_lea.hbm %s2, %s146
          %s149 = sshll.u32 %s140, 4
          %s150 = int_to_ptr.vmem [resolvable:$true] %s149
          %152 = dma.hbm_to_vmem [thread:$0]  %s147, 32, %s150, %s137
        $region24: #{tpu_custom_call.1} parent=15 // pred_fallthru
          _
      $region16: #{tpu_custom_call.1} parent=5 // pred_fallthru
        _
      %p153 = scmp.le.s32.totalorder 1, %s20
      %p154 = scmp.lt.s32.totalorder %s20, 9
      %p155 = pnand %p153, %p154
      %p156 = pneg %p155
      // Predicated region
      $region25: #{tpu_custom_call.1} parent=5 // pred_check
        _
      $region26: #{tpu_custom_call.1} parent=5 // pred_check_branch
        %158 = sbr.rel (%p155) target = $region28
      $region27: #{tpu_custom_call.1} parent=5 // pred_region
        %s159 = ssub.s32 %s20, 1
        %s160 = sand.u32 %s33, 1
        %s161 = scalar_lea.sflag [#allocation5], %s160
        %s162 = sand.u32 %s33, 1
        %s163 = smul.addr %s162, 2
        %s164 = scalar_lea.vmem [#allocation4], %s163
        // Predicated region
        $region29: #{tpu_custom_call.1} parent=27 // pred_check
          %p165 = pneg %p46
        $region30: #{tpu_custom_call.1} parent=27 // pred_check_branch
          %167 = sbr.rel (%p165) target = $region32
        $region31: #{tpu_custom_call.1} parent=27 // pred_region
          %168 = dma.done %s161, 32
        $region32: #{tpu_custom_call.1} parent=27 // pred_fallthru
          _
        %s169 = sand.u32 %s61, 1
        %s170 = scalar_lea.sflag [#allocation8], %s169
        %s171 = sand.u32 %s61, 1
        %s172 = smul.addr %s171, 2
        %s173 = scalar_lea.vmem [#allocation7], %s172
        // Predicated region
        $region33: #{tpu_custom_call.1} parent=27 // pred_check
          %p174 = pneg %p74
        $region34: #{tpu_custom_call.1} parent=27 // pred_check_branch
          %176 = sbr.rel (%p174) target = $region36
        $region35: #{tpu_custom_call.1} parent=27 // pred_region
          %177 = dma.done %s170, 32
        $region36: #{tpu_custom_call.1} parent=27 // pred_fallthru
          _
        %s178 = sand.u32 %s33, 1
        %s179 = scalar_lea.sflag [#allocation5], %s178
        %s180 = sand.u32 %s33, 1
        %s181 = smul.addr %s180, 2
        %s182 = scalar_lea.vmem [#allocation4], %s181
        %p183 = pneg %p46
        %p184 = pneg %p43
        %s185 = sand.u32 %s61, 1
        %s186 = scalar_lea.sflag [#allocation8], %s185
        %s187 = sand.u32 %s61, 1
        %s188 = smul.addr %s187, 2
        %s189 = scalar_lea.vmem [#allocation7], %s188
        %p190 = pneg %p74
        %p191 = pneg %p71
        %p192 = pneg %p95
        %p193 = pneg %p92
        %s194 = sld [smem:[#allocation3 + %s25]]
        %p195 = scmp.eq.s32.totalorder %s25, 0
        // Predicated region
        $region37: #{tpu_custom_call.1} parent=27 // pred_check
          %p196 = pneg %p195
        $region38: #{tpu_custom_call.1} parent=27 // pred_check_branch
          %198 = sbr.rel (%p196) target = $region40
        $region39: #{tpu_custom_call.1} parent=27 // pred_region
          %vm199 = vcmask 0
          %200 = vst.msk [vmem:[#allocation9] sm:$0x1] %vm199, 0.0
        $region40: #{tpu_custom_call.1} parent=27 // pred_fallthru
          _
        %v201 = vld [vmem:[%s164] sm:$0x3]
        %v202 = vld [vmem:[%s173] sm:$0x3]
        %v203 = vmul.f32 %v201, %v201
        %v204 = vmul.f32 %v202, %v202
        %v205 = vadd.f32 %v203, %v204
        %v206 = vmul.f32 %v201, %v202
        %v207 = vmul.f32 %v206, 2.0
        %v208 = vsub.f32 %v205, %v207
        %v210 = vlaneseq
        %v211 = vshrl.u32 %v210, 7
        %v212 = vsub.s32 0, %v211
        %v213 = vrot.slane %v208, %v212
        %v214 = vlaneseq
        %v215 = vshrl.u32 %v214, 7
        %v216 = vsub.s32 1, %v215
        %v217 = vrot.slane %v208, %v216
        %vm220 = vcmask 1040384
        %v221 = vsel %vm220, %v213, 0.0
        %v222 = vsel %vm220, %v217, 0.0
        %v223 = vadd.f32 %v221, %v222
        %224 = vadd.xlane.f32.xlu0 %v223
        %v225 = vpop.xlane.xlu0 %224
        %v226 = vld [vmem:[#allocation9] sm:$0x1]
        %v227 = vmax.f32 %v225, 1e-12
        %v228 = vmin.f32 %v227, 1e+12
        %v229 = vadd.f32 %v226, %v228
        %vm230 = vcmask 0
        %231 = vst.msk [vmem:[#allocation9] sm:$0x1] %vm230, %v229
        // Predicated region
        $region41: #{tpu_custom_call.1} parent=27 // pred_check
          %p232 = pneg %p92
        $region42: #{tpu_custom_call.1} parent=27 // pred_check_branch
          %234 = sbr.rel (%p232) target = $region44
        $region43: #{tpu_custom_call.1} parent=27 // pred_region
          %s236 = ssub.s32 16, 16
          %237 = vsyncadd [#allocation6], %s236
          %s239 = sshll.u32 [#allocation9], 4
          %s240 = int_to_ptr.vmem [resolvable:$true] %s239
          %242 = dma.vmem_to_hbm [thread:$0]  %s240, 16, %s3, [#allocation6]
        $region44: #{tpu_custom_call.1} parent=27 // pred_fallthru
          _
        // Predicated region
        $region45: #{tpu_custom_call.1} parent=27 // pred_check
          %p243 = pneg %p92
        $region46: #{tpu_custom_call.1} parent=27 // pred_check_branch
          %245 = sbr.rel (%p243) target = $region48
        $region47: #{tpu_custom_call.1} parent=27 // pred_region
          %246 = dma.done [#allocation6], 16
        $region48: #{tpu_custom_call.1} parent=27 // pred_fallthru
          _
      $region28: #{tpu_custom_call.1} parent=5 // pred_fallthru
        _
      %p247 = scmp.le.s32.totalorder 2, %s20
      // Predicated region
      $region49: #{tpu_custom_call.1} parent=5 // pred_check
        %p248 = pneg %p247
      $region50: #{tpu_custom_call.1} parent=5 // pred_check_branch
        %250 = sbr.rel (%p248) target = $region52
      $region51: #{tpu_custom_call.1} parent=5 // pred_region
        %s251 = ssub.s32 %s20, 2
      $region52: #{tpu_custom_call.1} parent=5 // pred_fallthru
        _
    $region6: #{tpu_custom_call.1} parent=1 // loop_footer
      %s24 = sadd.s32 1, %s20
    $region7: #{tpu_custom_call.1} parent=1 // loop_footer_branch
      %19 = sbr.rel target = $region3
    $region8: #{tpu_custom_call.1} parent=1 // loop_exit
      _
    %252 = vsyncpa [#allocation5], 1
    %s253 = scalar_lea.sflag [#allocation5], 1
    %254 = vsyncpa %s253, 1
    %255 = vsyncpa [#allocation8], 1
    %s256 = scalar_lea.sflag [#allocation8], 1
    %257 = vsyncpa %s256, 1
    %258 = vsyncpa [#allocation6], 1
    %s259 = scalar_lea.sflag [#allocation6], 1
    %260 = vsyncpa %s259, 1

</llo_original>
